<compile_context>
chip_gen: v6e
topology: v6e:2x2x1
jax: 0.10.0
libtpu: 0.0.40
codegen_flags: <defaults>
</compile_context>

<pallas_src>
import functools
import math

import jax
import jax.numpy as jnp
from jax.experimental import pallas as pl
from jax.experimental.pallas import tpu as pltpu


def _softmax_mlp_kernel(x_ref, w1_ref, b1_ref, w2_ref, b2_ref, w3_ref, b3_ref,
                        probs_ref, logits_ref):
    # One batch tile per grid step; weights/biases are VMEM-resident (constant
    # block index) so they are DMA'd once and reused across all grid steps.
    x = x_ref[...]

    h1 = jnp.dot(x, w1_ref[...], preferred_element_type=jnp.float32) + b1_ref[...]
    h1 = jnp.maximum(h1, 0.0)                                        # ReLU (f32)

    h2 = jnp.dot(h1.astype(w2_ref.dtype), w2_ref[...],
                 preferred_element_type=jnp.float32) + b2_ref[...]
    h2 = jnp.maximum(h2, 0.0)                                        # ReLU (f32)

    logits = jnp.dot(h2.astype(w3_ref.dtype), w3_ref[...],
                     preferred_element_type=jnp.float32) + b3_ref[...]

    # Numerically-stable softmax over the real out_dim lanes (no padding, no mask).
    m = jnp.max(logits, axis=-1, keepdims=True)
    e = jnp.exp(logits - m)
    denom = jnp.sum(e, axis=-1, keepdims=True)
    probs = e / denom                                                # exact normalization

    logits_ref[...] = logits.astype(logits_ref.dtype)
    probs_ref[...] = probs.astype(probs_ref.dtype)


def softmax_mlp(x, params, *, block_batch=2048, compute_dtype=jnp.float32):
    """Fused MLP + softmax. Returns (probs, logits), mirroring SoftmaxMLP.forward.

    compute_dtype=jnp.bfloat16 casts x and the weights in the wrapper (halves
    x DMA bytes, native bf16 MXU path); biases / ReLU / softmax stay f32.
    Default is f32 to keep tight tolerances.
    """
    w1, b1, w2, b2, w3, b3 = params
    batch, in_dim = x.shape
    out_dim = w3.shape[1]

    if compute_dtype != jnp.float32:
        # Hoist the dtype casts out of the kernel (done once, not per grid step).
        x = x.astype(compute_dtype)
        w1 = w1.astype(compute_dtype)
        w2 = w2.astype(compute_dtype)
        w3 = w3.astype(compute_dtype)

    # --- batch tiling ---------------------------------------------------------
    tb = max(8, min(block_batch, pl.cdiv(batch, 8) * 8))
    tb = pl.cdiv(tb, 8) * 8
    if batch > 8:
        # Guarantee >= 2 grid tiles so v7x's second TensorCore gets work
        # (no-op for v5e/v6e which have a single TC).
        half = pl.cdiv(pl.cdiv(batch, 2), 8) * 8
        tb = min(tb, half)
    padded_batch = pl.cdiv(batch, tb) * tb
    if padded_batch != batch:
        x = jnp.pad(x, ((0, padded_batch - batch), (0, 0)))
    grid = (padded_batch // tb,)

    def resident(a):  # same block every grid step -> stays in VMEM, DMA'd once
        return pl.BlockSpec(a.shape, lambda i: (0,) * a.ndim)

    itemsize = lambda a: a.dtype.itemsize
    flops = 2 * padded_batch * (w1.shape[0] * w1.shape[1]
                                + w2.shape[0] * w2.shape[1]
                                + w3.shape[0] * w3.shape[1])
    bytes_accessed = (x.size * itemsize(x)
                      + sum(int(p.size) * itemsize(p) for p in (w1, b1, w2, b2, w3, b3))
                      + 2 * padded_batch * out_dim * 4)
    cost = pl.CostEstimate(flops=int(flops),
                           transcendentals=int(padded_batch * out_dim),
                           bytes_accessed=int(bytes_accessed))

    probs_p, logits_p = pl.pallas_call(
        _softmax_mlp_kernel,
        out_shape=(
            jax.ShapeDtypeStruct((padded_batch, out_dim), jnp.float32),  # probs
            jax.ShapeDtypeStruct((padded_batch, out_dim), jnp.float32),  # logits
        ),
        grid=grid,
        in_specs=[
            pl.BlockSpec((tb, in_dim), lambda i: (i, 0)),
            resident(w1), resident(b1),
            resident(w2), resident(b2),
            resident(w3), resident(b3),
        ],
        out_specs=(
            pl.BlockSpec((tb, out_dim), lambda i: (i, 0)),
            pl.BlockSpec((tb, out_dim), lambda i: (i, 0)),
        ),
        compiler_params=pltpu.CompilerParams(
            dimension_semantics=("parallel",)),      # megacore sharding on v7x
        cost_estimate=cost,
    )(x, w1, b1, w2, b2, w3, b3)

    # Slice off batch padding (folds to a no-op when batch % tb == 0).
    return probs_p[:batch], logits_p[:batch]


def init_params(key, input_dim=8, output_dim=12, hidden_sizes=(64, 64)):
    """torch.nn.Linear-style init (U[-1/sqrt(fan_in), 1/sqrt(fan_in)]).

    Weights stored as (in_features, out_features); biases as (1, out_features).
    """
    dims = [input_dim] + list(hidden_sizes) + [output_dim]
    params = []
    for fan_in, fan_out in zip(dims[:-1], dims[1:]):
        kw, kb, key = jax.random.split(key, 3)
        bound = 1.0 / math.sqrt(fan_in)
        w = jax.random.uniform(kw, (fan_in, fan_out), jnp.float32, -bound, bound)
        b = jax.random.uniform(kb, (1, fan_out), jnp.float32, -bound, bound)
        params.extend([w, b])
    return tuple(params)


if __name__ == "__main__":
    key = jax.random.PRNGKey(0)
    k_x, k_p = jax.random.split(key)

    batch, input_dim, output_dim = 8, 8, 12
    hidden_sizes = (64, 64)

    x = jax.random.normal(k_x, (batch, input_dim), dtype=jnp.float32)
    params = init_params(k_p, input_dim, output_dim, hidden_sizes)

    probs, logits = softmax_mlp(x, params)
    jax.block_until_ready((probs, logits))

    # sanity checks against a plain-JAX reference
    w1, b1, w2, b2, w3, b3 = params
    h1 = jnp.maximum(x @ w1 + b1, 0.0)
    h2 = jnp.maximum(h1 @ w2 + b2, 0.0)
    ref_logits = h2 @ w3 + b3
    ref_probs = jax.nn.softmax(ref_logits, axis=1)

    assert probs.shape == (batch, output_dim)
    assert logits.shape == (batch, output_dim)
    assert jnp.allclose(logits, ref_logits, atol=1e-4, rtol=1e-4)
    assert jnp.allclose(probs, ref_probs, atol=1e-4, rtol=1e-4)
    assert jnp.allclose(jnp.sum(probs, axis=1), 1.0, atol=1e-5)

    print("KERNEL_OK")
</pallas_src>

<mosaic_0001>
module attributes {stable_mosaic.version = 11 : i64} {
  func.func @_softmax_mlp_kernel(%arg0: i32, %arg1: memref<8x8xf32, #tpu.memory_space<vmem>>, %arg2: memref<8x64xf32, #tpu.memory_space<vmem>>, %arg3: memref<1x64xf32, #tpu.memory_space<vmem>>, %arg4: memref<64x64xf32, #tpu.memory_space<vmem>>, %arg5: memref<1x64xf32, #tpu.memory_space<vmem>>, %arg6: memref<64x12xf32, #tpu.memory_space<vmem>>, %arg7: memref<1x12xf32, #tpu.memory_space<vmem>>, %arg8: memref<8x12xf32, #tpu.memory_space<vmem>>, %arg9: memref<8x12xf32, #tpu.memory_space<vmem>>) attributes {dimension_semantics = [#tpu.dimension_semantics<parallel>], iteration_bounds = array<i64: 1>, scalar_prefetch = 0 : i64, scratch_operands = 0 : i64, tpu.core_type = #tpu.core_type<tc>, window_params = [{transform_indices = @transform_0, window_bounds = array<i64: 8, 8>}, {pipeline_mode = #tpu.pipeline_mode<synchronous>, transform_indices = @transform_1, window_bounds = array<i64: 8, 64>}, {pipeline_mode = #tpu.pipeline_mode<synchronous>, transform_indices = @transform_2, window_bounds = array<i64: 1, 64>}, {pipeline_mode = #tpu.pipeline_mode<synchronous>, transform_indices = @transform_3, window_bounds = array<i64: 64, 64>}, {pipeline_mode = #tpu.pipeline_mode<synchronous>, transform_indices = @transform_4, window_bounds = array<i64: 1, 64>}, {pipeline_mode = #tpu.pipeline_mode<synchronous>, transform_indices = @transform_5, window_bounds = array<i64: 64, 12>}, {pipeline_mode = #tpu.pipeline_mode<synchronous>, transform_indices = @transform_6, window_bounds = array<i64: 1, 12>}, {transform_indices = @transform_7, window_bounds = array<i64: 8, 12>}, {transform_indices = @transform_8, window_bounds = array<i64: 8, 12>}]} {
    %c0 = arith.constant 0 : index
    %c0_0 = arith.constant 0 : index
    %0 = vector.load %arg1[%c0, %c0_0] : memref<8x8xf32, #tpu.memory_space<vmem>>, vector<8x8xf32>
    %c0_1 = arith.constant 0 : index
    %c0_2 = arith.constant 0 : index
    %1 = vector.load %arg2[%c0_1, %c0_2] : memref<8x64xf32, #tpu.memory_space<vmem>>, vector<8x64xf32>
    %cst = arith.constant dense<0.000000e+00> : vector<8x64xf32>
    %2 = tpu.matmul %0, %1, %cst {dimension_numbers = #tpu.dot_dimension_numbers<[1], [0], [0], [1], [0, 0, 1, 1], [], []>} : vector<8x8xf32>, vector<8x64xf32>, vector<8x64xf32> -> vector<8x64xf32>
    %c0_3 = arith.constant 0 : index
    %c0_4 = arith.constant 0 : index
    %3 = vector.load %arg3[%c0_3, %c0_4] : memref<1x64xf32, #tpu.memory_space<vmem>>, vector<1x64xf32>
    %4 = vector.broadcast %3 : vector<1x64xf32> to vector<8x64xf32>
    %5 = arith.addf %2, %4 : vector<8x64xf32>
    %cst_5 = arith.constant 0.000000e+00 : f32
    %6 = vector.broadcast %cst_5 : f32 to vector<8x64xf32>
    %7 = arith.maximumf %5, %6 : vector<8x64xf32>
    %c0_6 = arith.constant 0 : index
    %c0_7 = arith.constant 0 : index
    %8 = vector.load %arg4[%c0_6, %c0_7] : memref<64x64xf32, #tpu.memory_space<vmem>>, vector<64x64xf32>
    %cst_8 = arith.constant dense<0.000000e+00> : vector<8x64xf32>
    %9 = tpu.matmul %7, %8, %cst_8 {dimension_numbers = #tpu.dot_dimension_numbers<[1], [0], [0], [1], [0, 0, 1, 1], [], []>} : vector<8x64xf32>, vector<64x64xf32>, vector<8x64xf32> -> vector<8x64xf32>
    %c0_9 = arith.constant 0 : index
    %c0_10 = arith.constant 0 : index
    %10 = vector.load %arg5[%c0_9, %c0_10] : memref<1x64xf32, #tpu.memory_space<vmem>>, vector<1x64xf32>
    %11 = vector.broadcast %10 : vector<1x64xf32> to vector<8x64xf32>
    %12 = arith.addf %9, %11 : vector<8x64xf32>
    %cst_11 = arith.constant 0.000000e+00 : f32
    %13 = vector.broadcast %cst_11 : f32 to vector<8x64xf32>
    %14 = arith.maximumf %12, %13 : vector<8x64xf32>
    %c0_12 = arith.constant 0 : index
    %c0_13 = arith.constant 0 : index
    %15 = vector.load %arg6[%c0_12, %c0_13] : memref<64x12xf32, #tpu.memory_space<vmem>>, vector<64x12xf32>
    %cst_14 = arith.constant dense<0.000000e+00> : vector<8x12xf32>
    %16 = tpu.matmul %14, %15, %cst_14 {dimension_numbers = #tpu.dot_dimension_numbers<[1], [0], [0], [1], [0, 0, 1, 1], [], []>} : vector<8x64xf32>, vector<64x12xf32>, vector<8x12xf32> -> vector<8x12xf32>
    %c0_15 = arith.constant 0 : index
    %c0_16 = arith.constant 0 : index
    %17 = vector.load %arg7[%c0_15, %c0_16] : memref<1x12xf32, #tpu.memory_space<vmem>>, vector<1x12xf32>
    %18 = vector.broadcast %17 : vector<1x12xf32> to vector<8x12xf32>
    %19 = arith.addf %16, %18 : vector<8x12xf32>
    %cst_17 = arith.constant dense<0xFF800000> : vector<8xf32>
    %20 = vector.multi_reduction <maximumf>, %19, %cst_17 [1] : vector<8x12xf32> to vector<8xf32>
    %21 = vector.shape_cast %20 : vector<8xf32> to vector<8x1xf32>
    %22 = vector.broadcast %21 : vector<8x1xf32> to vector<8x12xf32>
    %23 = arith.subf %19, %22 : vector<8x12xf32>
    %24 = math.exp %23 : vector<8x12xf32>
    %cst_18 = arith.constant dense<0.000000e+00> : vector<8xf32>
    %25 = vector.multi_reduction <add>, %24, %cst_18 [1] : vector<8x12xf32> to vector<8xf32>
    %26 = vector.shape_cast %25 : vector<8xf32> to vector<8x1xf32>
    %27 = vector.broadcast %26 : vector<8x1xf32> to vector<8x12xf32>
    %28 = arith.divf %24, %27 : vector<8x12xf32>
    %c0_19 = arith.constant 0 : index
    %c0_20 = arith.constant 0 : index
    %29 = vector.load %arg9[%c0_19, %c0_20] : memref<8x12xf32, #tpu.memory_space<vmem>>, vector<8x12xf32>
    tpu.vector_store %arg9[%c0_19, %c0_20], %19 {strides = array<i32>} : memref<8x12xf32, #tpu.memory_space<vmem>>, vector<8x12xf32>,
    %c0_21 = arith.constant 0 : index
    %c0_22 = arith.constant 0 : index
    %30 = vector.load %arg8[%c0_21, %c0_22] : memref<8x12xf32, #tpu.memory_space<vmem>>, vector<8x12xf32>
    tpu.vector_store %arg8[%c0_21, %c0_22], %28 {strides = array<i32>} : memref<8x12xf32, #tpu.memory_space<vmem>>, vector<8x12xf32>,
    return
  }
  func.func @transform_0(%arg0: i32) -> (i32, i32) {
    %c0_i32 = arith.constant 0 : i32
    %c0_i32_0 = arith.constant 0 : i32
    return %arg0, %c0_i32 : i32, i32
  }
  func.func @transform_1(%arg0: i32) -> (i32, i32) {
    %c0_i32 = arith.constant 0 : i32
    %c0_i32_0 = arith.constant 0 : i32
    %c0_i32_1 = arith.constant 0 : i32
    return %c0_i32, %c0_i32_0 : i32, i32
  }
  func.func @transform_2(%arg0: i32) -> (i32, i32) {
    %c0_i32 = arith.constant 0 : i32
    %c0_i32_0 = arith.constant 0 : i32
    %c0_i32_1 = arith.constant 0 : i32
    return %c0_i32, %c0_i32_0 : i32, i32
  }
  func.func @transform_3(%arg0: i32) -> (i32, i32) {
    %c0_i32 = arith.constant 0 : i32
    %c0_i32_0 = arith.constant 0 : i32
    %c0_i32_1 = arith.constant 0 : i32
    return %c0_i32, %c0_i32_0 : i32, i32
  }
  func.func @transform_4(%arg0: i32) -> (i32, i32) {
    %c0_i32 = arith.constant 0 : i32
    %c0_i32_0 = arith.constant 0 : i32
    %c0_i32_1 = arith.constant 0 : i32
    return %c0_i32, %c0_i32_0 : i32, i32
  }
  func.func @transform_5(%arg0: i32) -> (i32, i32) {
    %c0_i32 = arith.constant 0 : i32
    %c0_i32_0 = arith.constant 0 : i32
    %c0_i32_1 = arith.constant 0 : i32
    return %c0_i32, %c0_i32_0 : i32, i32
  }
  func.func @transform_6(%arg0: i32) -> (i32, i32) {
    %c0_i32 = arith.constant 0 : i32
    %c0_i32_0 = arith.constant 0 : i32
    %c0_i32_1 = arith.constant 0 : i32
    return %c0_i32, %c0_i32_0 : i32, i32
  }
  func.func @transform_7(%arg0: i32) -> (i32, i32) {
    %c0_i32 = arith.constant 0 : i32
    %c0_i32_0 = arith.constant 0 : i32
    return %arg0, %c0_i32 : i32, i32
  }
  func.func @transform_8(%arg0: i32) -> (i32, i32) {
    %c0_i32 = arith.constant 0 : i32
    %c0_i32_0 = arith.constant 0 : i32
    return %arg0, %c0_i32 : i32, i32
  }
}

</mosaic_0001>

<llo_original>
// kernel: tpu_custom_call.1
$region0: #{tpu_custom_call.1}
  #allocation0 [shape = 'u32[]', space=smem, size = 0x4, offset = 0x4, fixed_abs, tag = 'smem constant byte address 0x4 - core index']
  #allocation1 [shape = 'u32[144,128]{1,0:T(1,128)}', space=vmem, size = 0x12000, scoped, tag = 'internal scratch']
  %s0 = inlined_call_operand.vmem [shape: f32[8,8], index: 0, kind: input, shape index: {}]
  %s1 = inlined_call_operand.vmem [shape: f32[8,64], index: 1, kind: input, shape index: {}]
  %s2 = inlined_call_operand.vmem [shape: f32[1,64], index: 2, kind: input, shape index: {}]
  %s3 = inlined_call_operand.vmem [shape: f32[64,64], index: 3, kind: input, shape index: {}]
  %s4 = inlined_call_operand.vmem [shape: f32[1,64], index: 4, kind: input, shape index: {}]
  %s5 = inlined_call_operand.vmem [shape: f32[64,12], index: 5, kind: input, shape index: {}]
  %s6 = inlined_call_operand.vmem [shape: f32[1,12], index: 6, kind: input, shape index: {}]
  %s7 = inlined_call_operand.hbm [shape: f32[8,12], index: 7, kind: output, shape index: {0}]
  %s8 = inlined_call_operand.hbm [shape: f32[8,12], index: 8, kind: output, shape index: {1}]
  %9 = xla_tuple %s7, %s8
  %s10 = sld [smem:[#allocation0]]
  $region46: #{tpu_custom_call.1} parent=0
    _
  %s12 = ssub.s32 1, %s10
  %s13 = scalar_select 0, %s12, %s10
  $region1: #{tpu_custom_call.1} parent=0
    #allocation2 [shape = 'u8[4096]{0}', space=vmem, size = 0x1000, scoped, tag = 'output window, operand 0, single buffered']
    #allocation3 [shape = 's32[1]{0}', space=sflag, size = 0x4, scoped, tag = 'scoped memory for tpu_custom_call.1']
    #allocation4 [shape = 'u8[4096]{0}', space=vmem, size = 0x1000, scoped, tag = 'output window, operand 1, single buffered']
    #allocation5 [shape = 's32[1]{0}', space=sflag, size = 0x4, scoped, tag = 'scoped memory for tpu_custom_call.1']
    %14 = vsyncpa [#allocation3], 0
    %15 = vsyncpa [#allocation5], 0
    // Predicated region
    $region2: #{tpu_custom_call.1} parent=1 // pred_check
      _
    $region3: #{tpu_custom_call.1} parent=1 // pred_check_branch
      %17 = sbr.rel (0) target = $region5
    $region4: #{tpu_custom_call.1} parent=1 // pred_region
      _
    $region5: #{tpu_custom_call.1} parent=1 // pred_fallthru
      _
    // Predicated region
    $region6: #{tpu_custom_call.1} parent=1 // pred_check
      _
    $region7: #{tpu_custom_call.1} parent=1 // pred_check_branch
      %19 = sbr.rel (0) target = $region9
    $region8: #{tpu_custom_call.1} parent=1 // pred_region
      _
    $region9: #{tpu_custom_call.1} parent=1 // pred_fallthru
      _
    // Predicated region
    $region10: #{tpu_custom_call.1} parent=1 // pred_check
      _
    $region11: #{tpu_custom_call.1} parent=1 // pred_check_branch
      %21 = sbr.rel (0) target = $region13
    $region12: #{tpu_custom_call.1} parent=1 // pred_region
      _
    $region13: #{tpu_custom_call.1} parent=1 // pred_fallthru
      _
    // Predicated region
    $region14: #{tpu_custom_call.1} parent=1 // pred_check
      _
    $region15: #{tpu_custom_call.1} parent=1 // pred_check_branch
      %23 = sbr.rel (0) target = $region17
    $region16: #{tpu_custom_call.1} parent=1 // pred_region
      _
    $region17: #{tpu_custom_call.1} parent=1 // pred_fallthru
      _
    // Predicated region
    $region18: #{tpu_custom_call.1} parent=1 // pred_check
      _
    $region19: #{tpu_custom_call.1} parent=1 // pred_check_branch
      %25 = sbr.rel (0) target = $region21
    $region20: #{tpu_custom_call.1} parent=1 // pred_region
      _
    $region21: #{tpu_custom_call.1} parent=1 // pred_fallthru
      _
    // Predicated region
    $region22: #{tpu_custom_call.1} parent=1 // pred_check
      _
    $region23: #{tpu_custom_call.1} parent=1 // pred_check_branch
      %27 = sbr.rel (0) target = $region25
    $region24: #{tpu_custom_call.1} parent=1 // pred_region
      _
    $region25: #{tpu_custom_call.1} parent=1 // pred_fallthru
      _
    // Predicated region
    $region26: #{tpu_custom_call.1} parent=1 // pred_check
      _
    $region27: #{tpu_custom_call.1} parent=1 // pred_check_branch
      %29 = sbr.rel (0) target = $region29
    $region28: #{tpu_custom_call.1} parent=1 // pred_region
      _
    $region29: #{tpu_custom_call.1} parent=1 // pred_fallthru
      _
    %v30 = vld [vmem:[%s0] sm:$0xff]
    %v31 = vld [vmem:[%s1] sm:$0xff]
    %v32 = vld [vmem:[%s2] sm:$0x1]
    %v34 = vlaneseq
    %v35 = vshrl.u32 %v34, 7
    %v36 = vsub.s32 0, %v35
    %v37 = vrot.slane %v32, %v36
    %vm39 = vcmask 64512
    %v41 = vsel %vm39, %v30, 0
    %43 = vmatprep.subr.mxu0 0.0
    %44 = vmatpush1.msra.mxu0 0.0
    %45 = vmatprep.subr.mxu0 0.0
    %46 = vmatpush1.msra.mxu0 0.0
    %47 = vmatprep.subr.mxu0 0.0
    %48 = vmatpush1.msra.mxu0 0.0
    %49 = vmatprep.subr.mxu0 0.0
    %50 = vmatpush1.msra.mxu0 0.0
    %51 = vmatprep.subr.mxu0 0.0
    %52 = vmatpush1.msra.mxu0 0.0
    %53 = vmatprep.subr.mxu0 0.0
    %54 = vmatpush1.msra.mxu0 0.0
    %55 = vmatprep.subr.mxu0 0.0
    %56 = vmatpush1.msra.mxu0 0.0
    %57 = vmatprep.subr.mxu0 0.0
    %58 = vmatpush1.msra.mxu0 0.0
    %59 = vmatprep.subr.mxu0 0.0
    %60 = vmatpush1.msra.mxu0 0.0
    %61 = vmatprep.subr.mxu0 0.0
    %62 = vmatpush1.msra.mxu0 0.0
    %63 = vmatprep.subr.mxu0 0.0
    %64 = vmatpush1.msra.mxu0 0.0
    %65 = vmatprep.subr.mxu0 0.0
    %66 = vmatpush1.msra.mxu0 0.0
    %67 = vmatprep.subr.mxu0 0.0
    %68 = vmatpush1.msra.mxu0 0.0
    %69 = vmatprep.subr.mxu0 0.0
    %70 = vmatpush1.msra.mxu0 0.0
    %71 = vmatprep.subr.mxu0 0.0
    %72 = vmatpush1.msra.mxu0 0.0
    %73 = vmatprep.subr.mxu0 0.0
    %74 = vmatpush1.msra.mxu0 %v31
    %75 = vmatprep.subr.mxu0 0.0
    %76 = vmatpush2.msra.mxu0 0.0
    %77 = vmatprep.subr.mxu0 0.0
    %78 = vmatpush2.msra.mxu0 0.0
    %79 = vmatprep.subr.mxu0 0.0
    %80 = vmatpush2.msra.mxu0 0.0
    %81 = vmatprep.subr.mxu0 0.0
    %82 = vmatpush2.msra.mxu0 0.0
    %83 = vmatprep.subr.mxu0 0.0
    %84 = vmatpush2.msra.mxu0 0.0
    %85 = vmatprep.subr.mxu0 0.0
    %86 = vmatpush2.msra.mxu0 0.0
    %87 = vmatprep.subr.mxu0 0.0
    %88 = vmatpush2.msra.mxu0 0.0
    %89 = vmatprep.subr.mxu0 0.0
    %90 = vmatpush2.msra.mxu0 0.0
    %91 = vmatprep.subr.mxu0 0.0
    %92 = vmatpush2.msra.mxu0 0.0
    %93 = vmatprep.subr.mxu0 0.0
    %94 = vmatpush2.msra.mxu0 0.0
    %95 = vmatprep.subr.mxu0 0.0
    %96 = vmatpush2.msra.mxu0 0.0
    %97 = vmatprep.subr.mxu0 0.0
    %98 = vmatpush2.msra.mxu0 0.0
    %99 = vmatprep.subr.mxu0 0.0
    %100 = vmatpush2.msra.mxu0 0.0
    %101 = vmatprep.subr.mxu0 0.0
    %102 = vmatpush2.msra.mxu0 0.0
    %103 = vmatprep.subr.mxu0 0.0
    %104 = vmatpush2.msra.mxu0 0.0
    %105 = vmatprep.subr.mxu0 0.0
    %106 = vmatpush2.msra.mxu0 0.0
    %107 = vmatprep.mubr.f32.mxu0 0.0
    %108 = vmatmul.mubr.f32.gmra.mxu0 %v41
    %v109 = vpop.f32.mrf.mxu0
    %v110 = vadd.f32 %v37, %v109
    %v111 = vpop.f32.mrf.mxu0
    %112 = vdwg.mxu0
    %v113 = vmax.f32 %v110, 0.0
    %v114 = vld [vmem:[%s3] sm:$0xff]
    %v115 = vld [vmem:[%s3 + $0x8] sm:$0xff]
    %v116 = vld [vmem:[%s3 + $0x10] sm:$0xff]
    %v117 = vld [vmem:[%s3 + $0x18] sm:$0xff]
    %v118 = vld [vmem:[%s3 + $0x20] sm:$0xff]
    %v119 = vld [vmem:[%s3 + $0x28] sm:$0xff]
    %v120 = vld [vmem:[%s3 + $0x30] sm:$0xff]
    %v121 = vld [vmem:[%s3 + $0x38] sm:$0xff]
    %v122 = vld [vmem:[%s4] sm:$0x1]
    %v124 = vlaneseq
    %v125 = vshrl.u32 %v124, 7
    %v126 = vsub.s32 0, %v125
    %v127 = vrot.slane %v122, %v126
    %vm129 = vcmask 523264
    %v131 = vsel %vm129, %v113, 0
    %133 = vmatprep.subr.mxu0 0.0
    %134 = vmatpush1.msra.mxu0 0.0
    %135 = vmatprep.subr.mxu0 0.0
    %136 = vmatpush1.msra.mxu0 0.0
    %137 = vmatprep.subr.mxu0 0.0
    %138 = vmatpush1.msra.mxu0 0.0
    %139 = vmatprep.subr.mxu0 0.0
    %140 = vmatpush1.msra.mxu0 0.0
    %141 = vmatprep.subr.mxu0 0.0
    %142 = vmatpush1.msra.mxu0 0.0
    %143 = vmatprep.subr.mxu0 0.0
    %144 = vmatpush1.msra.mxu0 0.0
    %145 = vmatprep.subr.mxu0 0.0
    %146 = vmatpush1.msra.mxu0 0.0
    %147 = vmatprep.subr.mxu0 0.0
    %148 = vmatpush1.msra.mxu0 0.0
    %149 = vmatprep.subr.mxu0 0.0
    %150 = vmatpush1.msra.mxu0 %v121
    %151 = vmatprep.subr.mxu0 0.0
    %152 = vmatpush1.msra.mxu0 %v120
    %153 = vmatprep.subr.mxu0 0.0
    %154 = vmatpush1.msra.mxu0 %v119
    %155 = vmatprep.subr.mxu0 0.0
    %156 = vmatpush1.msra.mxu0 %v118
    %157 = vmatprep.subr.mxu0 0.0
    %158 = vmatpush1.msra.mxu0 %v117
    %159 = vmatprep.subr.mxu0 0.0
    %160 = vmatpush1.msra.mxu0 %v116
    %161 = vmatprep.subr.mxu0 0.0
    %162 = vmatpush1.msra.mxu0 %v115
    %163 = vmatprep.subr.mxu0 0.0
    %164 = vmatpush1.msra.mxu0 %v114
    %165 = vmatprep.subr.mxu0 0.0
    %166 = vmatpush2.msra.mxu0 0.0
    %167 = vmatprep.subr.mxu0 0.0
    %168 = vmatpush2.msra.mxu0 0.0
    %169 = vmatprep.subr.mxu0 0.0
    %170 = vmatpush2.msra.mxu0 0.0
    %171 = vmatprep.subr.mxu0 0.0
    %172 = vmatpush2.msra.mxu0 0.0
    %173 = vmatprep.subr.mxu0 0.0
    %174 = vmatpush2.msra.mxu0 0.0
    %175 = vmatprep.subr.mxu0 0.0
    %176 = vmatpush2.msra.mxu0 0.0
    %177 = vmatprep.subr.mxu0 0.0
    %178 = vmatpush2.msra.mxu0 0.0
    %179 = vmatprep.subr.mxu0 0.0
    %180 = vmatpush2.msra.mxu0 0.0
    %181 = vmatprep.subr.mxu0 0.0
    %182 = vmatpush2.msra.mxu0 0.0
    %183 = vmatprep.subr.mxu0 0.0
    %184 = vmatpush2.msra.mxu0 0.0
    %185 = vmatprep.subr.mxu0 0.0
    %186 = vmatpush2.msra.mxu0 0.0
    %187 = vmatprep.subr.mxu0 0.0
    %188 = vmatpush2.msra.mxu0 0.0
    %189 = vmatprep.subr.mxu0 0.0
    %190 = vmatpush2.msra.mxu0 0.0
    %191 = vmatprep.subr.mxu0 0.0
    %192 = vmatpush2.msra.mxu0 0.0
    %193 = vmatprep.subr.mxu0 0.0
    %194 = vmatpush2.msra.mxu0 0.0
    %195 = vmatprep.subr.mxu0 0.0
    %196 = vmatpush2.msra.mxu0 0.0
    %197 = vmatprep.mubr.f32.mxu0 0.0
    %198 = vmatmul.mubr.f32.gmra.mxu0 %v131
    %v199 = vpop.f32.mrf.mxu0
    %v200 = vadd.f32 %v127, %v199
    %v201 = vpop.f32.mrf.mxu0
    %202 = vdwg.mxu0
    %v203 = vmax.f32 %v200, 0.0
    %v204 = vld [vmem:[%s5] sm:$0xff]
    %v205 = vld [vmem:[%s5 + $0x8] sm:$0xff]
    %v206 = vld [vmem:[%s5 + $0x10] sm:$0xff]
    %v207 = vld [vmem:[%s5 + $0x18] sm:$0xff]
    %v208 = vld [vmem:[%s5 + $0x20] sm:$0xff]
    %v209 = vld [vmem:[%s5 + $0x28] sm:$0xff]
    %v210 = vld [vmem:[%s5 + $0x30] sm:$0xff]
    %v211 = vld [vmem:[%s5 + $0x38] sm:$0xff]
    %v212 = vld [vmem:[%s6] sm:$0x1]
    %v214 = vlaneseq
    %v215 = vshrl.u32 %v214, 7
    %v216 = vsub.s32 0, %v215
    %v217 = vrot.slane %v212, %v216
    %v220 = vsel %vm129, %v203, 0
    %222 = vmatprep.subr.mxu0 0.0
    %223 = vmatpush1.msra.mxu0 0.0
    %224 = vmatprep.subr.mxu0 0.0
    %225 = vmatpush1.msra.mxu0 0.0
    %226 = vmatprep.subr.mxu0 0.0
    %227 = vmatpush1.msra.mxu0 0.0
    %228 = vmatprep.subr.mxu0 0.0
    %229 = vmatpush1.msra.mxu0 0.0
    %230 = vmatprep.subr.mxu0 0.0
    %231 = vmatpush1.msra.mxu0 0.0
    %232 = vmatprep.subr.mxu0 0.0
    %233 = vmatpush1.msra.mxu0 0.0
    %234 = vmatprep.subr.mxu0 0.0
    %235 = vmatpush1.msra.mxu0 0.0
    %236 = vmatprep.subr.mxu0 0.0
    %237 = vmatpush1.msra.mxu0 0.0
    %238 = vmatprep.subr.mxu0 0.0
    %239 = vmatpush1.msra.mxu0 %v211
    %240 = vmatprep.subr.mxu0 0.0
    %241 = vmatpush1.msra.mxu0 %v210
    %242 = vmatprep.subr.mxu0 0.0
    %243 = vmatpush1.msra.mxu0 %v209
    %244 = vmatprep.subr.mxu0 0.0
    %245 = vmatpush1.msra.mxu0 %v208
    %246 = vmatprep.subr.mxu0 0.0
    %247 = vmatpush1.msra.mxu0 %v207
    %248 = vmatprep.subr.mxu0 0.0
    %249 = vmatpush1.msra.mxu0 %v206
    %250 = vmatprep.subr.mxu0 0.0
    %251 = vmatpush1.msra.mxu0 %v205
    %252 = vmatprep.subr.mxu0 0.0
    %253 = vmatpush1.msra.mxu0 %v204
    %254 = vmatprep.subr.mxu0 0.0
    %255 = vmatpush2.msra.mxu0 0.0
    %256 = vmatprep.subr.mxu0 0.0
    %257 = vmatpush2.msra.mxu0 0.0
    %258 = vmatprep.subr.mxu0 0.0
    %259 = vmatpush2.msra.mxu0 0.0
    %260 = vmatprep.subr.mxu0 0.0
    %261 = vmatpush2.msra.mxu0 0.0
    %262 = vmatprep.subr.mxu0 0.0
    %263 = vmatpush2.msra.mxu0 0.0
    %264 = vmatprep.subr.mxu0 0.0
    %265 = vmatpush2.msra.mxu0 0.0
    %266 = vmatprep.subr.mxu0 0.0
    %267 = vmatpush2.msra.mxu0 0.0
    %268 = vmatprep.subr.mxu0 0.0
    %269 = vmatpush2.msra.mxu0 0.0
    %270 = vmatprep.subr.mxu0 0.0
    %271 = vmatpush2.msra.mxu0 0.0
    %272 = vmatprep.subr.mxu0 0.0
    %273 = vmatpush2.msra.mxu0 0.0
    %274 = vmatprep.subr.mxu0 0.0
    %275 = vmatpush2.msra.mxu0 0.0
    %276 = vmatprep.subr.mxu0 0.0
    %277 = vmatpush2.msra.mxu0 0.0
    %278 = vmatprep.subr.mxu0 0.0
    %279 = vmatpush2.msra.mxu0 0.0
    %280 = vmatprep.subr.mxu0 0.0
    %281 = vmatpush2.msra.mxu0 0.0
    %282 = vmatprep.subr.mxu0 0.0
    %283 = vmatpush2.msra.mxu0 0.0
    %284 = vmatprep.subr.mxu0 0.0
    %285 = vmatpush2.msra.mxu0 0.0
    %286 = vmatprep.mubr.f32.mxu0 0.0
    %287 = vmatmul.mubr.f32.gmra.mxu0 %v220
    %v288 = vpop.f32.mrf.mxu0
    %v289 = vadd.f32 %v217, %v288
    %v290 = vpop.f32.mrf.mxu0
    %291 = vdwg.mxu0
    %vm292 = vcmask 97280
    %v293 = vsel %vm292, %v289, -inf
    %294 = vmax.xlane.f32.xlu0 %v293
    %v295 = vpop.xlane.xlu0 %294
    %v296 = vsub.f32 %v289, %v295
    %v297 = vmul.f32 %v296, 1.442695
    %v298 = vpow.pop %v297
    %v299 = vsel %vm292, %v298, 0.0
    %300 = vadd.xlane.f32.xlu0 %v299
    %v301 = vpop.xlane.xlu0 %300
    %v302 = vrcp.pop %v301
    %v303 = vmul.f32 %v298, %v302
    %304 = vst.msk [vmem:[#allocation4] sm:$0xff] %vm292, %v289
    %305 = vst.msk [vmem:[#allocation2] sm:$0xff] %vm292, %v303
    // Predicated region
    $region30: #{tpu_custom_call.1} parent=1 // pred_check
      _
    $region31: #{tpu_custom_call.1} parent=1 // pred_check_branch
      %307 = sbr.rel (0) target = $region33
    $region32: #{tpu_custom_call.1} parent=1 // pred_region
      %s309 = ssub.s32 128, 128
      %310 = vsyncadd [#allocation3], %s309
      %s312 = sshll.u32 [#allocation2], 4
      %s313 = int_to_ptr.vmem [resolvable:$true] %s312
      %315 = dma.vmem_to_hbm [thread:$0]  %s313, 128, %s7, [#allocation3]
    $region33: #{tpu_custom_call.1} parent=1 // pred_fallthru
      _
    // Predicated region
    $region34: #{tpu_custom_call.1} parent=1 // pred_check
      _
    $region35: #{tpu_custom_call.1} parent=1 // pred_check_branch
      %317 = sbr.rel (0) target = $region37
    $region36: #{tpu_custom_call.1} parent=1 // pred_region
      %s319 = ssub.s32 128, 128
      %320 = vsyncadd [#allocation5], %s319
      %s322 = sshll.u32 [#allocation4], 4
      %s323 = int_to_ptr.vmem [resolvable:$true] %s322
      %325 = dma.vmem_to_hbm [thread:$0]  %s323, 128, %s8, [#allocation5]
    $region37: #{tpu_custom_call.1} parent=1 // pred_fallthru
      _
    // Predicated region
    $region38: #{tpu_custom_call.1} parent=1 // pred_check
      _
    $region39: #{tpu_custom_call.1} parent=1 // pred_check_branch
      %327 = sbr.rel (0) target = $region41
    $region40: #{tpu_custom_call.1} parent=1 // pred_region
      %328 = dma.done [#allocation3], 128
    $region41: #{tpu_custom_call.1} parent=1 // pred_fallthru
      _
    // Predicated region
    $region42: #{tpu_custom_call.1} parent=1 // pred_check
      _
    $region43: #{tpu_custom_call.1} parent=1 // pred_check_branch
      %330 = sbr.rel (0) target = $region45
    $region44: #{tpu_custom_call.1} parent=1 // pred_region
      %331 = dma.done [#allocation5], 128
    $region45: #{tpu_custom_call.1} parent=1 // pred_fallthru
      _
    %332 = vsyncpa [#allocation3], 1
    %333 = vsyncpa [#allocation5], 1

</llo_original>
